<compile_context>
chip_gen: v6e
topology: v6e:2x2x1
jax: 0.10.0
libtpu: 0.0.40
codegen_flags: <defaults>
</compile_context>

<pallas_src>
import functools

import jax
import jax.numpy as jnp
from jax import lax
from jax.experimental import pallas as pl
from jax.experimental.pallas import tpu as pltpu


def _sublayer_connection_kernel(seed_ref, x_ref, a2_ref, b2_ref, w_ref, bw_ref,
                                o_ref, *, eps, dropout_p, training):
    x = x_ref[...].astype(jnp.float32)                      # (tm, D), f32 math
    D = x.shape[-1]

    # ---- LayerNorm (torch semantics: unbiased std, eps added to std) ----
    mean = jnp.mean(x, axis=-1, keepdims=True)
    xc = x - mean
    var_unbiased = jnp.sum(xc * xc, axis=-1, keepdims=True) * (1.0 / float(D - 1))
    std = jnp.sqrt(var_unbiased)
    y = (xc / (std + eps)) * a2_ref[...].astype(jnp.float32) \
        + b2_ref[...].astype(jnp.float32)

    # ---- sublayer: Linear(D, D) — bf16 operands on the MXU, f32 accumulate ----
    z = jnp.dot(y.astype(w_ref.dtype), w_ref[...],
                preferred_element_type=jnp.float32) + bw_ref[...].astype(jnp.float32)

    # ---- inverted dropout (identity in eval mode) ----
    if training and dropout_p > 0.0:
        # Counter-based hash PRNG (portable: lowers on TPU and in interpret).
        # TODO(synk): deterministic per seed but cannot bit-match torch's RNG.
        tm_rows = z.shape[0]
        seed_u = seed_ref[0].astype(jnp.uint32)
        row = lax.broadcasted_iota(jnp.uint32, z.shape, 0)
        col = lax.broadcasted_iota(jnp.uint32, z.shape, 1)
        g_row = row + (pl.program_id(0) * tm_rows).astype(jnp.uint32)
        idx = g_row * jnp.uint32(z.shape[1]) + col           # global element id
        # Multiplicative seed mix (avoids seed/tile collisions), then murmur3
        # finalizer for avalanche.  Pure VPU int ops: hidden under HBM roofline.
        h = idx ^ (seed_u * jnp.uint32(2654435761))
        h = (h ^ (h >> 16)) * jnp.uint32(0x85EBCA6B)
        h = (h ^ (h >> 13)) * jnp.uint32(0xC2B2AE35)
        h = h ^ (h >> 16)
        thresh = jnp.uint32(min(int(dropout_p * 4294967296.0), 0xFFFFFFFF))
        z = jnp.where(h >= thresh, z * (1.0 / (1.0 - dropout_p)), 0.0)

    # ---- residual add ----
    o_ref[...] = (x + z).astype(o_ref.dtype)


def _row_tile(rows, tm_max):
    """Largest multiple-of-8 row tile <= tm_max that divides `rows`; prefer one
    giving >= 4 grid steps (pipeline overlap / 2 steps per v7x core).  Returns
    (tile, exact); exact=False means the last grid block will be ragged."""
    hi = min(tm_max, rows)
    hi = max(8, hi - hi % 8)
    divisors = [t for t in range(8, hi + 1, 8) if rows % t == 0]
    if divisors:
        pipelined = [t for t in divisors if rows // t >= 4]
        return (max(pipelined) if pipelined else max(divisors)), True
    return hi, False


def sublayer_connection(x, a_2, b_2, w, b_w, *, eps=1e-6, dropout_p=0.0,
                        training=False, seed=0, tm=512, mxu_dtype=jnp.bfloat16):
    """x: (B, S, D). Returns x + dropout(Linear(LayerNorm(x))) in x.dtype."""
    B, S, D = x.shape
    rows = B * S
    x2d = x.reshape(rows, D)                 # no pad, no trailing slice

    tm_eff, exact = _row_tile(rows, tm)
    grid = pl.cdiv(rows, tm_eff)
    # When `exact` is False the last block is ragged: garbage rows never escape
    # (all math is row-independent and the partial store only writes valid rows).

    a2 = a_2.reshape(1, D).astype(jnp.float32)
    b2 = b_2.reshape(1, D).astype(jnp.float32)
    bw = b_w.reshape(1, D).astype(jnp.float32)
    w_mxu = w.astype(mxu_dtype)              # bf16 weight: native MXU operand
    seed_arr = jnp.asarray([seed], dtype=jnp.int32)

    # VMEM budget: double-buffered x/out tiles + single-buffered weight/params
    # + f32 temporaries; capped at 75% of physical VMEM (64 MiB fallback ~ v7x).
    xb = jnp.dtype(x.dtype).itemsize
    vmem_bytes = (4 * tm_eff * D * xb                       # x + out, 2 bufs each
                  + D * D * jnp.dtype(mxu_dtype).itemsize   # weight, 1 buffer
                  + 3 * D * 4                               # params, 1 buffer
                  + 2 * tm_eff * D * 4)                     # f32 temporaries
    try:
        vmem_cap = int(pltpu.get_tpu_info().vmem_capacity_bytes)
    except Exception:
        vmem_cap = 64 << 20
    vmem_limit = int(min(max(int(vmem_bytes * 1.5) + (2 << 20), 16 << 20),
                         (vmem_cap * 3) // 4))

    kernel = functools.partial(_sublayer_connection_kernel,
                               eps=eps, dropout_p=dropout_p, training=training)

    # Constant-index operands never change block -> single VMEM buffer.
    resident = dict(pipeline_mode=pl.Buffered(1))

    out2d = pl.pallas_call(
        kernel,
        out_shape=jax.ShapeDtypeStruct((rows, D), x.dtype),
        grid_spec=pltpu.PrefetchScalarGridSpec(
            num_scalar_prefetch=1,                           # seed -> SMEM
            grid=(grid,),
            in_specs=[
                pl.BlockSpec((tm_eff, D), lambda i, s: (i, 0)),          # x tile
                pl.BlockSpec((1, D), lambda i, s: (0, 0), **resident),   # a_2
                pl.BlockSpec((1, D), lambda i, s: (0, 0), **resident),   # b_2
                pl.BlockSpec((D, D), lambda i, s: (0, 0), **resident),   # weight
                pl.BlockSpec((1, D), lambda i, s: (0, 0), **resident),   # bias
            ],
            out_specs=pl.BlockSpec((tm_eff, D), lambda i, s: (i, 0)),
        ),
        compiler_params=pltpu.CompilerParams(
            dimension_semantics=("parallel",),
            vmem_limit_bytes=vmem_limit),
    )(seed_arr, x2d, a2, b2, w_mxu, bw)

    return out2d.reshape(B, S, D)


def _reference(x, a_2, b_2, w, b_w, eps=1e-6):
    xf = x.astype(jnp.float32)
    D = xf.shape[-1]
    mean = jnp.mean(xf, axis=-1, keepdims=True)
    xc = xf - mean
    std = jnp.sqrt(jnp.sum(xc * xc, axis=-1, keepdims=True) / (D - 1))
    y = a_2 * xc / (std + eps) + b_2
    z = jnp.einsum("bsd,de->bse", y, w) + b_w
    return (xf + z).astype(x.dtype)          # dropout is identity in eval mode


if __name__ == "__main__":
    key = jax.random.PRNGKey(0)
    B, S, D = 2, 8, 128     # D multiple of 128 -> lane-dense, unmasked stores

    kx, kw, kb = jax.random.split(key, 3)
    x = jax.random.normal(kx, (B, S, D), dtype=jnp.float32)

    # LayerNorm params per torch __init__: ones / zeros.
    a_2 = jnp.ones((D,), jnp.float32)
    b_2 = jnp.zeros((D,), jnp.float32)

    # Deterministic synthetic sublayer (Linear(D, D)).
    w = jax.random.normal(kw, (D, D), dtype=jnp.float32) * 0.05
    b_w = jax.random.normal(kb, (D,), dtype=jnp.float32) * 0.05

    # Eval mode: dropout = identity; check against the f32 reference.
    out = sublayer_connection(x, a_2, b_2, w, b_w, dropout_p=0.1, training=False)
    out = jax.block_until_ready(out)
    ref = _reference(x, a_2, b_2, w, b_w)
    assert out.shape == (B, S, D)
    # bf16 MXU operands -> slightly loosened tolerance vs all-f32 reference.
    assert jnp.max(jnp.abs(out - ref)) < 3e-2, "mismatch vs reference"

    # Training mode: exercise the seeded hash-PRNG dropout path.
    out_tr = sublayer_connection(x, a_2, b_2, w, b_w, dropout_p=0.1,
                                 training=True, seed=42)
    out_tr = jax.block_until_ready(out_tr)
    assert jnp.all(jnp.isfinite(out_tr))
    drop_frac = float(jnp.mean((out_tr == x).astype(jnp.float32)))
    assert 0.03 < drop_frac < 0.22, "dropout rate far from p=0.1"

    print("KERNEL_OK")
</pallas_src>

<mosaic_0001>
module attributes {stable_mosaic.version = 11 : i64} {
  func.func @_sublayer_connection_kernel(%arg0: i32, %arg1: memref<1xi32, #tpu.memory_space<smem>>, %arg2: memref<16x128xf32, #tpu.memory_space<vmem>>, %arg3: memref<1x128xf32, #tpu.memory_space<vmem>>, %arg4: memref<1x128xf32, #tpu.memory_space<vmem>>, %arg5: memref<128x128xbf16, #tpu.memory_space<vmem>>, %arg6: memref<1x128xf32, #tpu.memory_space<vmem>>, %arg7: memref<16x128xf32, #tpu.memory_space<vmem>>) attributes {dimension_semantics = [#tpu.dimension_semantics<parallel>], iteration_bounds = array<i64: 1>, scalar_prefetch = 1 : i64, scratch_operands = 0 : i64, tpu.core_type = #tpu.core_type<tc>, window_params = [{transform_indices = @transform_0, window_bounds = array<i64: 16, 128>}, {pipeline_mode = #tpu.pipeline_mode<synchronous>, transform_indices = @transform_1, window_bounds = array<i64: 1, 128>}, {pipeline_mode = #tpu.pipeline_mode<synchronous>, transform_indices = @transform_2, window_bounds = array<i64: 1, 128>}, {pipeline_mode = #tpu.pipeline_mode<synchronous>, transform_indices = @transform_3, window_bounds = array<i64: 128, 128>}, {pipeline_mode = #tpu.pipeline_mode<synchronous>, transform_indices = @transform_4, window_bounds = array<i64: 1, 128>}, {transform_indices = @transform_5, window_bounds = array<i64: 16, 128>}]} {
    %c0 = arith.constant 0 : index
    %c0_0 = arith.constant 0 : index
    %0 = vector.load %arg2[%c0, %c0_0] : memref<16x128xf32, #tpu.memory_space<vmem>>, vector<16x128xf32>
    %cst = arith.constant dense<0.000000e+00> : vector<16xf32>
    %1 = vector.multi_reduction <add>, %0, %cst [1] : vector<16x128xf32> to vector<16xf32>
    %2 = vector.shape_cast %1 : vector<16xf32> to vector<16x1xf32>
    %cst_1 = arith.constant 1.280000e+02 : f32
    %3 = vector.broadcast %cst_1 : f32 to vector<16x1xf32>
    %4 = arith.divf %2, %3 : vector<16x1xf32>
    %5 = vector.broadcast %4 : vector<16x1xf32> to vector<16x128xf32>
    %6 = arith.subf %0, %5 : vector<16x128xf32>
    %7 = arith.mulf %6, %6 : vector<16x128xf32>
    %cst_2 = arith.constant dense<0.000000e+00> : vector<16xf32>
    %8 = vector.multi_reduction <add>, %7, %cst_2 [1] : vector<16x128xf32> to vector<16xf32>
    %9 = vector.shape_cast %8 : vector<16xf32> to vector<16x1xf32>
    %cst_3 = arith.constant 0.00787401571 : f32
    %10 = vector.broadcast %cst_3 : f32 to vector<16x1xf32>
    %11 = arith.mulf %9, %10 : vector<16x1xf32>
    %12 = math.sqrt %11 : vector<16x1xf32>
    %cst_4 = arith.constant 9.99999997E-7 : f32
    %13 = vector.broadcast %cst_4 : f32 to vector<16x1xf32>
    %14 = arith.addf %12, %13 : vector<16x1xf32>
    %15 = vector.broadcast %14 : vector<16x1xf32> to vector<16x128xf32>
    %16 = arith.divf %6, %15 : vector<16x128xf32>
    %c0_5 = arith.constant 0 : index
    %c0_6 = arith.constant 0 : index
    %17 = vector.load %arg3[%c0_5, %c0_6] : memref<1x128xf32, #tpu.memory_space<vmem>>, vector<1x128xf32>
    %18 = vector.broadcast %17 : vector<1x128xf32> to vector<16x128xf32>
    %19 = arith.mulf %16, %18 : vector<16x128xf32>
    %c0_7 = arith.constant 0 : index
    %c0_8 = arith.constant 0 : index
    %20 = vector.load %arg4[%c0_7, %c0_8] : memref<1x128xf32, #tpu.memory_space<vmem>>, vector<1x128xf32>
    %21 = vector.broadcast %20 : vector<1x128xf32> to vector<16x128xf32>
    %22 = arith.addf %19, %21 : vector<16x128xf32>
    %23 = arith.truncf %22 : vector<16x128xf32> to vector<16x128xbf16>
    %c0_9 = arith.constant 0 : index
    %c0_10 = arith.constant 0 : index
    %24 = vector.load %arg5[%c0_9, %c0_10] : memref<128x128xbf16, #tpu.memory_space<vmem>>, vector<128x128xbf16>
    %cst_11 = arith.constant dense<0.000000e+00> : vector<16x128xf32>
    %25 = tpu.matmul %23, %24, %cst_11 {dimension_numbers = #tpu.dot_dimension_numbers<[1], [0], [0], [1], [0, 0, 1, 1], [], []>} : vector<16x128xbf16>, vector<128x128xbf16>, vector<16x128xf32> -> vector<16x128xf32>
    %c0_12 = arith.constant 0 : index
    %c0_13 = arith.constant 0 : index
    %26 = vector.load %arg6[%c0_12, %c0_13] : memref<1x128xf32, #tpu.memory_space<vmem>>, vector<1x128xf32>
    %27 = vector.broadcast %26 : vector<1x128xf32> to vector<16x128xf32>
    %28 = arith.addf %25, %27 : vector<16x128xf32>
    %29 = arith.addf %0, %28 : vector<16x128xf32>
    %c0_14 = arith.constant 0 : index
    %c0_15 = arith.constant 0 : index
    %30 = vector.load %arg7[%c0_14, %c0_15] : memref<16x128xf32, #tpu.memory_space<vmem>>, vector<16x128xf32>
    tpu.vector_store %arg7[%c0_14, %c0_15], %29 {strides = array<i32>} : memref<16x128xf32, #tpu.memory_space<vmem>>, vector<16x128xf32>,
    return
  }
  func.func @transform_0(%arg0: i32, %arg1: memref<1xi32, #tpu.memory_space<smem>>) -> (i32, i32) {
    %c0_i32 = arith.constant 0 : i32
    %c0_i32_0 = arith.constant 0 : i32
    return %arg0, %c0_i32 : i32, i32
  }
  func.func @transform_1(%arg0: i32, %arg1: memref<1xi32, #tpu.memory_space<smem>>) -> (i32, i32) {
    %c0_i32 = arith.constant 0 : i32
    %c0_i32_0 = arith.constant 0 : i32
    %c0_i32_1 = arith.constant 0 : i32
    return %c0_i32, %c0_i32_0 : i32, i32
  }
  func.func @transform_2(%arg0: i32, %arg1: memref<1xi32, #tpu.memory_space<smem>>) -> (i32, i32) {
    %c0_i32 = arith.constant 0 : i32
    %c0_i32_0 = arith.constant 0 : i32
    %c0_i32_1 = arith.constant 0 : i32
    return %c0_i32, %c0_i32_0 : i32, i32
  }
  func.func @transform_3(%arg0: i32, %arg1: memref<1xi32, #tpu.memory_space<smem>>) -> (i32, i32) {
    %c0_i32 = arith.constant 0 : i32
    %c0_i32_0 = arith.constant 0 : i32
    %c0_i32_1 = arith.constant 0 : i32
    return %c0_i32, %c0_i32_0 : i32, i32
  }
  func.func @transform_4(%arg0: i32, %arg1: memref<1xi32, #tpu.memory_space<smem>>) -> (i32, i32) {
    %c0_i32 = arith.constant 0 : i32
    %c0_i32_0 = arith.constant 0 : i32
    %c0_i32_1 = arith.constant 0 : i32
    return %c0_i32, %c0_i32_0 : i32, i32
  }
  func.func @transform_5(%arg0: i32, %arg1: memref<1xi32, #tpu.memory_space<smem>>) -> (i32, i32) {
    %c0_i32 = arith.constant 0 : i32
    %c0_i32_0 = arith.constant 0 : i32
    return %arg0, %c0_i32 : i32, i32
  }
}

</mosaic_0001>

<llo_original>
// kernel: tpu_custom_call.1
$region0: #{tpu_custom_call.1}
  #allocation0 [shape = 'u32[]', space=smem, size = 0x4, offset = 0x4, fixed_abs, tag = 'smem constant byte address 0x4 - core index']
  #allocation1 [shape = 'u32[144,128]{1,0:T(1,128)}', space=vmem, size = 0x12000, scoped, tag = 'internal scratch']
  #allocation2 [shape = 's32[1]{0}', space=sflag, size = 0x4, scoped, tag = 'scoped memory for tpu_custom_call.1']
  #allocation3 [shape = 's32[1]{0:T(128)S(6)}', space=smem, size = 0x200, scoped, tag = 'prefetched SMEM operand 0']
  %s0 = inlined_call_operand.<no memory space> [shape: s32[1], index: 0, kind: input, shape index: {}]
  %s1 = inlined_call_operand.hbm [shape: f32[16,128], index: 1, kind: input, shape index: {}]
  %s2 = inlined_call_operand.vmem [shape: f32[1,128], index: 2, kind: input, shape index: {}]
  %s3 = inlined_call_operand.vmem [shape: f32[1,128], index: 3, kind: input, shape index: {}]
  %s4 = inlined_call_operand.hbm [shape: bf16[128,128], index: 4, kind: input, shape index: {}]
  %s5 = inlined_call_operand.vmem [shape: f32[1,128], index: 5, kind: input, shape index: {}]
  %s6 = inlined_call_operand.hbm [shape: f32[16,128], index: 6, kind: output, shape index: {}]
  %s7 = sld [smem:[#allocation0]]
  $region38: #{tpu_custom_call.1} parent=0
    _
  %s9 = ssub.s32 1, %s7
  %s10 = scalar_select 0, %s9, %s7
  %11 = sst [smem:[#allocation3]] %s0
  $region1: #{tpu_custom_call.1} parent=0
    #allocation4 [shape = 'u8[8192]{0}', space=vmem, size = 0x2000, scoped, tag = 'input window, operand 1, single buffered']
    #allocation5 [shape = 's32[1]{0}', space=sflag, size = 0x4, scoped, tag = 'scoped memory for tpu_custom_call.1']
    #allocation6 [shape = 's32[1]{0}', space=sflag, size = 0x4, scoped, tag = 'scoped memory for tpu_custom_call.1']
    #allocation7 [shape = 'u8[32768]{0}', space=vmem, size = 0x8000, scoped, tag = 'input window, operand 4, single buffered']
    #allocation8 [shape = 's32[1]{0}', space=sflag, size = 0x4, scoped, tag = 'scoped memory for tpu_custom_call.1']
    #allocation9 [shape = 'u8[8192]{0}', space=vmem, size = 0x2000, scoped, tag = 'output window, operand 0, single buffered']
    %12 = vsyncpa [#allocation5], 0
    %13 = vsyncpa [#allocation8], 0
    %14 = vsyncpa [#allocation6], 0
    // Predicated region
    $region2: #{tpu_custom_call.1} parent=1 // pred_check
      _
    $region3: #{tpu_custom_call.1} parent=1 // pred_check_branch
      %16 = sbr.rel (0) target = $region5
    $region4: #{tpu_custom_call.1} parent=1 // pred_region
      %s18 = ssub.s32 256, 256
      %19 = vsyncadd [#allocation5], %s18
      %s20 = sshll.u32 [#allocation4], 4
      %s21 = int_to_ptr.vmem [resolvable:$true] %s20
      %26 = dma.hbm_to_vmem [thread:$0]  %s1, 256, %s21, [#allocation5], 128, 128, 8
    $region5: #{tpu_custom_call.1} parent=1 // pred_fallthru
      _
    // Predicated region
    $region6: #{tpu_custom_call.1} parent=1 // pred_check
      _
    $region7: #{tpu_custom_call.1} parent=1 // pred_check_branch
      %28 = sbr.rel (0) target = $region9
    $region8: #{tpu_custom_call.1} parent=1 // pred_region
      _
    $region9: #{tpu_custom_call.1} parent=1 // pred_fallthru
      _
    // Predicated region
    $region10: #{tpu_custom_call.1} parent=1 // pred_check
      _
    $region11: #{tpu_custom_call.1} parent=1 // pred_check_branch
      %30 = sbr.rel (0) target = $region13
    $region12: #{tpu_custom_call.1} parent=1 // pred_region
      _
    $region13: #{tpu_custom_call.1} parent=1 // pred_fallthru
      _
    // Predicated region
    $region14: #{tpu_custom_call.1} parent=1 // pred_check
      _
    $region15: #{tpu_custom_call.1} parent=1 // pred_check_branch
      %32 = sbr.rel (0) target = $region17
    $region16: #{tpu_custom_call.1} parent=1 // pred_region
      %s34 = ssub.s32 1024, 1024
      %35 = vsyncadd [#allocation8], %s34
      %s36 = sshll.u32 [#allocation7], 4
      %s37 = int_to_ptr.vmem [resolvable:$true] %s36
      %42 = dma.hbm_to_vmem [thread:$0]  %s4, 1024, %s37, [#allocation8], 64, 64, 4
    $region17: #{tpu_custom_call.1} parent=1 // pred_fallthru
      _
    // Predicated region
    $region18: #{tpu_custom_call.1} parent=1 // pred_check
      _
    $region19: #{tpu_custom_call.1} parent=1 // pred_check_branch
      %44 = sbr.rel (0) target = $region21
    $region20: #{tpu_custom_call.1} parent=1 // pred_region
      _
    $region21: #{tpu_custom_call.1} parent=1 // pred_fallthru
      _
    // Predicated region
    $region22: #{tpu_custom_call.1} parent=1 // pred_check
      _
    $region23: #{tpu_custom_call.1} parent=1 // pred_check_branch
      %46 = sbr.rel (0) target = $region25
    $region24: #{tpu_custom_call.1} parent=1 // pred_region
      %47 = dma.done [#allocation5], 256
    $region25: #{tpu_custom_call.1} parent=1 // pred_fallthru
      _
    // Predicated region
    $region26: #{tpu_custom_call.1} parent=1 // pred_check
      _
    $region27: #{tpu_custom_call.1} parent=1 // pred_check_branch
      %49 = sbr.rel (0) target = $region29
    $region28: #{tpu_custom_call.1} parent=1 // pred_region
      %50 = dma.done [#allocation8], 1024
    $region29: #{tpu_custom_call.1} parent=1 // pred_fallthru
      _
    %v52 = vld [vmem:[#allocation4] sm:$0xff]
    %v53 = vld [vmem:[#allocation4 + $0x8] sm:$0xff]
    %54 = vadd.xlane.f32.xlu0 %v52
    %v55 = vpop.xlane.xlu0 %54
    %56 = vadd.xlane.f32.xlu0 %v53
    %v57 = vpop.xlane.xlu0 %56
    %v58 = vrcp.pop 128.0
    %v59 = vmul.f32 %v55, %v58
    %v60 = vmul.f32 %v57, %v58
    %v61 = vsub.f32 %v52, %v59
    %v62 = vsub.f32 %v53, %v60
    %v63 = vmul.f32 %v61, %v61
    %v64 = vmul.f32 %v62, %v62
    %65 = vadd.xlane.f32.xlu0 %v63
    %v66 = vpop.xlane.xlu0 %65
    %67 = vadd.xlane.f32.xlu0 %v64
    %v68 = vpop.xlane.xlu0 %67
    %v69 = vmul.f32 %v66, 0.007874016
    %v70 = vmul.f32 %v68, 0.007874016
    %v71 = vrsqrt.pop %v69
    %v72 = vmul.f32 %v69, %v71
    %vm73 = vcmp.eq.f32.partialorder %v69, inf
    %v74 = vsel %vm73, %v69, %v72
    %vm75 = vcmp.eq.f32.partialorder %v69, 0.0
    %v76 = vand.u32 %v69, 2147483648
    %v77 = vsel %vm75, %v76, %v74
    %v78 = vrsqrt.pop %v70
    %v79 = vmul.f32 %v70, %v78
    %vm80 = vcmp.eq.f32.partialorder %v70, inf
    %v81 = vsel %vm80, %v70, %v79
    %vm82 = vcmp.eq.f32.partialorder %v70, 0.0
    %v83 = vand.u32 %v70, 2147483648
    %v84 = vsel %vm82, %v83, %v81
    %v85 = vadd.f32 %v77, 1e-06
    %v86 = vadd.f32 %v84, 1e-06
    %v87 = vrcp.pop %v85
    %v88 = vmul.f32 %v61, %v87
    %v89 = vrcp.pop %v86
    %v90 = vmul.f32 %v62, %v89
    %v91 = vld [vmem:[%s2] sm:$0x1]
    %v93 = vlaneseq
    %v94 = vshrl.u32 %v93, 7
    %v95 = vsub.s32 0, %v94
    %v96 = vrot.slane %v91, %v95
    %v98 = vmul.f32 %v88, %v96
    %v99 = vmul.f32 %v90, %v96
    %v100 = vld [vmem:[%s3] sm:$0x1]
    %v102 = vlaneseq
    %v103 = vshrl.u32 %v102, 7
    %v104 = vsub.s32 0, %v103
    %v105 = vrot.slane %v100, %v104
    %v107 = vadd.f32 %v98, %v105
    %v108 = vadd.f32 %v99, %v105
    %v109 = vpack.c.bf16 %v108, %v107
    %v110 = vld [vmem:[#allocation7] sm:$0xf]
    %v111 = vld [vmem:[#allocation7 + $0x4] sm:$0xf]
    %v112 = vld [vmem:[#allocation7 + $0x8] sm:$0xf]
    %v113 = vld [vmem:[#allocation7 + $0xc] sm:$0xf]
    %v114 = vld [vmem:[#allocation7 + $0x10] sm:$0xf]
    %v115 = vld [vmem:[#allocation7 + $0x14] sm:$0xf]
    %v116 = vld [vmem:[#allocation7 + $0x18] sm:$0xf]
    %v117 = vld [vmem:[#allocation7 + $0x1c] sm:$0xf]
    %v118 = vld [vmem:[#allocation7 + $0x20] sm:$0xf]
    %v119 = vld [vmem:[#allocation7 + $0x24] sm:$0xf]
    %v120 = vld [vmem:[#allocation7 + $0x28] sm:$0xf]
    %v121 = vld [vmem:[#allocation7 + $0x2c] sm:$0xf]
    %v122 = vld [vmem:[#allocation7 + $0x30] sm:$0xf]
    %v123 = vld [vmem:[#allocation7 + $0x34] sm:$0xf]
    %v124 = vld [vmem:[#allocation7 + $0x38] sm:$0xf]
    %v125 = vld [vmem:[#allocation7 + $0x3c] sm:$0xf]
    %v126 = vld [vmem:[%s5] sm:$0x1]
    %v128 = vlaneseq
    %v129 = vshrl.u32 %v128, 7
    %v130 = vsub.s32 0, %v129
    %v131 = vrot.slane %v126, %v130
    %v149 = vunpack.c.l.b16 %v110
    %v150 = vunpack.c.l.b16 %v111
    %v151 = vunpack.c.l.b16 %v112
    %v152 = vunpack.c.l.b16 %v113
    %v153 = vunpack.c.l.b16 %v114
    %v154 = vunpack.c.l.b16 %v115
    %v155 = vunpack.c.l.b16 %v116
    %v156 = vunpack.c.l.b16 %v117
    %v157 = vunpack.c.l.b16 %v118
    %v158 = vunpack.c.l.b16 %v119
    %v159 = vunpack.c.l.b16 %v120
    %v160 = vunpack.c.l.b16 %v121
    %v161 = vunpack.c.l.b16 %v122
    %v162 = vunpack.c.l.b16 %v123
    %v163 = vunpack.c.l.b16 %v124
    %v164 = vunpack.c.l.b16 %v125
    %v165 = vpack.c.b16 %v150, %v149
    %v166 = vpack.c.b16 %v152, %v151
    %v167 = vpack.c.b16 %v154, %v153
    %v168 = vpack.c.b16 %v156, %v155
    %v169 = vpack.c.b16 %v158, %v157
    %v170 = vpack.c.b16 %v160, %v159
    %v171 = vpack.c.b16 %v162, %v161
    %v172 = vpack.c.b16 %v164, %v163
    %181 = vmatprep.subr.bf16.mxu0 0
    %182 = vmatpush1.bf16.msra.mxu0 %v172
    %183 = vmatprep.subr.bf16.mxu0 0
    %184 = vmatpush1.bf16.msra.mxu0 %v171
    %185 = vmatprep.subr.bf16.mxu0 0
    %186 = vmatpush1.bf16.msra.mxu0 %v170
    %187 = vmatprep.subr.bf16.mxu0 0
    %188 = vmatpush1.bf16.msra.mxu0 %v169
    %189 = vmatprep.subr.bf16.mxu0 0
    %190 = vmatpush1.bf16.msra.mxu0 %v168
    %191 = vmatprep.subr.bf16.mxu0 0
    %192 = vmatpush1.bf16.msra.mxu0 %v167
    %193 = vmatprep.subr.bf16.mxu0 0
    %194 = vmatpush1.bf16.msra.mxu0 %v166
    %195 = vmatprep.subr.bf16.mxu0 0
    %196 = vmatpush1.bf16.msra.mxu0 %v165
    %197 = vmatprep.subr.bf16.mxu0 0
    %198 = vmatpush2.bf16.msra.mxu0 0
    %199 = vmatprep.subr.bf16.mxu0 0
    %200 = vmatpush2.bf16.msra.mxu0 0
    %201 = vmatprep.subr.bf16.mxu0 0
    %202 = vmatpush2.bf16.msra.mxu0 0
    %203 = vmatprep.subr.bf16.mxu0 0
    %204 = vmatpush2.bf16.msra.mxu0 0
    %205 = vmatprep.subr.bf16.mxu0 0
    %206 = vmatpush2.bf16.msra.mxu0 0
    %207 = vmatprep.subr.bf16.mxu0 0
    %208 = vmatpush2.bf16.msra.mxu0 0
    %209 = vmatprep.subr.bf16.mxu0 0
    %210 = vmatpush2.bf16.msra.mxu0 0
    %211 = vmatprep.subr.bf16.mxu0 0
    %212 = vmatpush2.bf16.msra.mxu0 0
    %213 = vmatprep.mubr.bf16.mxu0 0
    %214 = vmatmul.mubr.bf16.gmra.mxu0 %v109
    %v215 = vpop.f32.mrf.mxu0
    %v216 = vadd.f32 %v131, %v215
    %v217 = vpop.f32.mrf.mxu0
    %v218 = vpop.f32.mrf.mxu0
    %v219 = vadd.f32 %v131, %v218
    %v220 = vpop.f32.mrf.mxu0
    %221 = vdwg.mxu0
    %v222 = vadd.f32 %v52, %v216
    %v223 = vadd.f32 %v53, %v219
    %224 = vst [vmem:[#allocation9] sm:$0xff] %v222
    %225 = vst [vmem:[#allocation9 + $0x8] sm:$0xff] %v223
    // Predicated region
    $region30: #{tpu_custom_call.1} parent=1 // pred_check
      _
    $region31: #{tpu_custom_call.1} parent=1 // pred_check_branch
      %227 = sbr.rel (0) target = $region33
    $region32: #{tpu_custom_call.1} parent=1 // pred_region
      %s229 = ssub.s32 256, 256
      %230 = vsyncadd [#allocation6], %s229
      %s231 = sshll.u32 [#allocation9], 4
      %s232 = int_to_ptr.vmem [resolvable:$true] %s231
      %237 = dma.vmem_to_hbm [thread:$0]  %s232, 256, %s6, [#allocation6], 128, 128, 8
    $region33: #{tpu_custom_call.1} parent=1 // pred_fallthru
      _
    // Predicated region
    $region34: #{tpu_custom_call.1} parent=1 // pred_check
      _
    $region35: #{tpu_custom_call.1} parent=1 // pred_check_branch
      %239 = sbr.rel (0) target = $region37
    $region36: #{tpu_custom_call.1} parent=1 // pred_region
      %240 = dma.done [#allocation6], 256
    $region37: #{tpu_custom_call.1} parent=1 // pred_fallthru
      _
    %241 = vsyncpa [#allocation5], 1
    %242 = vsyncpa [#allocation8], 1
    %243 = vsyncpa [#allocation6], 1

</llo_original>
